<compile_context>
chip_gen: v5e
topology: v5e:2x2
jax: 0.10.0
libtpu: 0.0.40
codegen_flags: <defaults>
</compile_context>

<pallas_src>
import jax
import jax.numpy as jnp
from jax.experimental import pallas as pl
from jax.experimental.pallas import tpu as pltpu


def _round_up(v, m):
    return (v + m - 1) // m * m


# --------------------------------------------------------------------------- #
# Kernels
# --------------------------------------------------------------------------- #
def _attn_pool_kernel_masked(x_ref, w1_ref, b1_ref, w2_ref, b2_ref, mask_ref, o_ref):
    # x_ref:    (Bt, Sp, E)   input tile
    # w1_ref:   (E, Hp)       att_fc1 weight (resident, constant index map)
    # b1_ref:   (1, Hp)       att_fc1 bias
    # w2_ref:   (1, Hp)       att_fc2 weight, pre-transposed to a row
    # b2_ref:   (1, 1)        att_fc2 bias scalar (SMEM)
    # mask_ref: (Bt, Sp)      lane-dense mask (0 for padded / masked positions)
    # o_ref:    (Bt, E)       pooled output (lane-dense)
    Bt, Sp, E = x_ref.shape

    x = x_ref[...]
    xf = x.reshape(Bt * Sp, E)                       # batch-fold: MXU M = Bt*Sp

    # fc1 + tanh  (MXU matmul with f32 accumulation; tanh on the EUP slot)
    e = jnp.tanh(
        jnp.dot(xf, w1_ref[...], preferred_element_type=jnp.float32)
        + b1_ref[...].astype(jnp.float32)
    )                                                # (Bt*Sp, Hp) f32

    # fc2 (N=1) as VPU multiply + lane reduce -> no MXU push/drain for 1 column
    score = (
        jnp.sum(e * w2_ref[...].astype(jnp.float32), axis=-1, keepdims=True)
        + b2_ref[0, 0]
    )                                                # (Bt*Sp, 1)

    # exp without max-subtraction (matches the reference; tanh bounds |score|)
    alpha = jnp.exp(score).reshape(Bt, Sp, 1)
    alpha = alpha * mask_ref[...].astype(jnp.float32).reshape(Bt, Sp, 1)

    # normalize over seq: one exact reciprocal per batch row + broadcast multiply
    denom = jnp.sum(alpha, axis=1, keepdims=True) + 1e-8      # (Bt, 1, 1)
    alpha = alpha * (1.0 / denom)

    # weighted pooling with no transposes: broadcast-mul + sublane reduce over Sp
    pooled = jnp.sum(x.astype(jnp.float32) * alpha, axis=1)   # (Bt, E)
    o_ref[...] = pooled.astype(o_ref.dtype)


def _attn_pool_kernel_nomask(x_ref, w1_ref, b1_ref, w2_ref, b2_ref, o_ref):
    # Mask-free variant (attn_mask is None AND S needed no padding).
    Bt, Sp, E = x_ref.shape
    x = x_ref[...]
    xf = x.reshape(Bt * Sp, E)
    e = jnp.tanh(
        jnp.dot(xf, w1_ref[...], preferred_element_type=jnp.float32)
        + b1_ref[...].astype(jnp.float32)
    )
    score = (
        jnp.sum(e * w2_ref[...].astype(jnp.float32), axis=-1, keepdims=True)
        + b2_ref[0, 0]
    )
    alpha = jnp.exp(score).reshape(Bt, Sp, 1)
    denom = jnp.sum(alpha, axis=1, keepdims=True) + 1e-8
    alpha = alpha * (1.0 / denom)
    pooled = jnp.sum(x.astype(jnp.float32) * alpha, axis=1)
    o_ref[...] = pooled.astype(o_ref.dtype)


# --------------------------------------------------------------------------- #
# VMEM accounting & batch-tile selection
# --------------------------------------------------------------------------- #
def _step_vmem_bytes(bt, sp, e, hp, x_itemsize, masked):
    """Approximate per-grid-step VMEM footprint (bytes)."""
    x_tile = 2 * bt * sp * e * x_itemsize                       # double-buffered x
    x_f32 = bt * sp * e * 4 if x_itemsize != 4 else 0           # f32 upcast for pooling
    act = bt * sp * hp * 4                                       # fc1 activation (f32)
    mask_tile = 2 * _round_up(bt, 8) * _round_up(sp, 128) * 4 if masked else 0
    out_tile = 2 * _round_up(bt, 8) * _round_up(e, 128) * x_itemsize
    misc = 4 * bt * sp * 4                                       # score/alpha temporaries
    return x_tile + x_f32 + act + mask_tile + out_tile + misc


def _weight_vmem_bytes(e, hp, w_itemsize):
    # Budget for (possibly double-buffered) resident weight blocks.
    w1 = _round_up(e, 8) * _round_up(hp, 128) * w_itemsize
    vecs = 2 * 8 * _round_up(hp, 128) * 4                        # b1 row + w2 row (padded)
    return 2 * (w1 + vecs)


def _choose_bt(B, sp, e, hp, x_itemsize, masked, budget):
    def fits(bt):
        return _step_vmem_bytes(bt, sp, e, hp, x_itemsize, masked) <= budget

    # Largest bt in [1, B] fitting the budget (footprint is monotone in bt).
    if fits(B):
        bt = B
    else:
        lo, hi = 1, B
        while lo < hi:
            mid = (lo + hi + 1) // 2
            if fits(mid):
                lo = mid
            else:
                hi = mid - 1
        bt = lo

    if bt >= B:
        # Whole batch fits in one step.  Prefer >= 2 steps (megacore / v7x dual
        # TensorCores) if the folded MXU M-dim stays large enough per step.
        half = _round_up(-(-B // 2), 8)
        if B > 1 and half < B and half * sp >= 512 and fits(half):
            bt = half
    else:
        # Multi-step grid: keep the (Bt,S)/(Bt,E) block sublane dim 8-aligned.
        bt = max(8, bt - bt % 8)
    return bt


# --------------------------------------------------------------------------- #
# Wrapper
# --------------------------------------------------------------------------- #
def attention_pooling(x, w1, b1, w2, b2, attn_mask=None, *,
                      vmem_budget_bytes=24 << 20):
    """Pallas TPU AttentionPooling.forward.

    x: (B, S, E); w1: (E, H); b1: (H,); w2: (H, 1); b2: (1,);
    attn_mask: (B, S) or None.  Returns (B, E).
    """
    B, S, E = x.shape
    H = w1.shape[1]
    out_dtype = x.dtype

    # ---- pad H (weights only, cheap) to a lane multiple of 128; padded cols
    #      produce tanh(0)=0 activations times zero w2 -> exactly inert.
    Hp = _round_up(H, 128)
    if Hp != H:
        w1 = jnp.pad(w1, ((0, 0), (0, Hp - H)))
        b1 = jnp.pad(jnp.reshape(b1, (-1,)), (0, Hp - H))
        w2 = jnp.pad(jnp.reshape(w2, (-1,)), (0, Hp - H))
    b1_2d = jnp.reshape(b1, (1, Hp))
    w2_row = jnp.reshape(w2, (1, Hp))                 # (H,1) -> (1,Hp) row
    b2_2d = jnp.reshape(b2, (1, 1)).astype(jnp.float32)

    # ---- pad S to the sublane packing of x's dtype (8 f32 / 16 bf16 / 32 int8)
    s_align = 8 * max(1, 4 // x.dtype.itemsize)
    Sp = _round_up(S, s_align)
    masked = (attn_mask is not None) or (Sp != S)
    if Sp != S:
        x = jnp.pad(x, ((0, 0), (0, Sp - S), (0, 0)))
    if masked:
        m = (jnp.ones((B, S), jnp.float32) if attn_mask is None
             else jnp.reshape(attn_mask, (B, S)).astype(jnp.float32))
        if Sp != S:
            m = jnp.pad(m, ((0, 0), (0, Sp - S)))     # padded rows carry mask = 0

    # ---- batch tiling: cdiv grid, pad B so no divisor requirement on Bt
    Bt = _choose_bt(B, Sp, E, Hp, x.dtype.itemsize, masked, vmem_budget_bytes)
    n_steps = -(-B // Bt)
    Bp = n_steps * Bt
    if Bp != B:
        x = jnp.pad(x, ((0, Bp - B), (0, 0), (0, 0)))
        if masked:
            m = jnp.pad(m, ((0, Bp - B), (0, 0)))

    # ---- explicit scoped-VMEM limit covering the real footprint
    step_bytes = _step_vmem_bytes(Bt, Sp, E, Hp, x.dtype.itemsize, masked)
    weight_bytes = _weight_vmem_bytes(E, Hp, w1.dtype.itemsize)
    vmem_limit = int(max(32 << 20, step_bytes + weight_bytes + (2 << 20)))

    cost = pl.CostEstimate(
        flops=2 * Bp * Sp * E * Hp + 2 * Bp * Sp * Hp + 2 * Bp * Sp * E,
        transcendentals=Bp * Sp * (Hp + 1),           # tanh + exp
        bytes_accessed=(
            x.size * x.dtype.itemsize
            + w1.size * w1.dtype.itemsize
            + (m.size * 4 if masked else 0)
            + Bp * E * x.dtype.itemsize
        ),
    )

    common_in_specs = [
        pl.BlockSpec((Bt, Sp, E), lambda b: (b, 0, 0)),          # x tile
        pl.BlockSpec((E, Hp), lambda b: (0, 0)),                 # w1 (resident)
        pl.BlockSpec((1, Hp), lambda b: (0, 0)),                 # b1 (resident)
        pl.BlockSpec((1, Hp), lambda b: (0, 0)),                 # w2 row (resident)
        pl.BlockSpec(memory_space=pltpu.MemorySpace.SMEM),       # b2 scalar
    ]
    out_spec = pl.BlockSpec((Bt, E), lambda b: (b, 0))
    params = pltpu.CompilerParams(
        dimension_semantics=("parallel",),
        vmem_limit_bytes=vmem_limit,
    )

    if masked:
        out = pl.pallas_call(
            _attn_pool_kernel_masked,
            out_shape=jax.ShapeDtypeStruct((Bp, E), out_dtype),
            grid=(n_steps,),
            in_specs=common_in_specs
            + [pl.BlockSpec((Bt, Sp), lambda b: (b, 0))],        # lane-dense mask
            out_specs=out_spec,
            compiler_params=params,
            cost_estimate=cost,
        )(x, w1, b1_2d, w2_row, b2_2d, m)
    else:
        out = pl.pallas_call(
            _attn_pool_kernel_nomask,
            out_shape=jax.ShapeDtypeStruct((Bp, E), out_dtype),
            grid=(n_steps,),
            in_specs=common_in_specs,
            out_specs=out_spec,
            compiler_params=params,
            cost_estimate=cost,
        )(x, w1, b1_2d, w2_row, b2_2d)

    return out[:B] if Bp != B else out


# --------------------------------------------------------------------------- #
# Pure-JAX reference (mirrors the PyTorch forward exactly)
# --------------------------------------------------------------------------- #
def attention_pooling_ref(x, w1, b1, w2, b2, attn_mask=None):
    e = jnp.tanh(x @ w1 + b1)                       # (B, S, H)
    alpha = jnp.exp(e @ w2 + b2)                    # (B, S, 1)
    if attn_mask is not None:
        alpha = alpha * attn_mask[..., None]
    alpha = alpha / (jnp.sum(alpha, axis=1, keepdims=True) + 1e-8)
    out = jnp.einsum("bse,bsk->bek", x, alpha)      # (B, E, 1)
    return out.reshape(x.shape[0], -1)


if __name__ == "__main__":
    # --- aligned small case (B=2, S=8, E=32, H=32) ---
    B, S, E, H = 2, 8, 32, 32
    key = jax.random.PRNGKey(0)
    kx, kw1, kb1, kw2, kb2, km = jax.random.split(key, 6)

    x = jax.random.normal(kx, (B, S, E), dtype=jnp.float32)
    # Deterministic synthetic parameters (not loaded from a checkpoint).
    w1 = jax.random.normal(kw1, (E, H), dtype=jnp.float32) * 0.1
    b1 = jax.random.normal(kb1, (H,), dtype=jnp.float32) * 0.01
    w2 = jax.random.normal(kw2, (H, 1), dtype=jnp.float32) * 0.1
    b2 = jax.random.normal(kb2, (1,), dtype=jnp.float32) * 0.01
    attn_mask = (jax.random.uniform(km, (B, S)) > 0.2).astype(jnp.float32)

    out = attention_pooling(x, w1, b1, w2, b2, attn_mask)
    jax.block_until_ready(out)
    ref = attention_pooling_ref(x, w1, b1, w2, b2, attn_mask)
    assert out.shape == (B, E)
    assert jnp.allclose(out, ref, atol=1e-5, rtol=1e-5)

    # --- mask-free path (separate kernel, no mask DMA stream) ---
    out_nm = attention_pooling(x, w1, b1, w2, b2, None)
    jax.block_until_ready(out_nm)
    assert jnp.allclose(out_nm, attention_pooling_ref(x, w1, b1, w2, b2, None),
                        atol=1e-5, rtol=1e-5)

    # --- unaligned shapes: exercises S padding (10 -> 16) and H padding (20 -> 128) ---
    B2, S2, E2, H2 = 3, 10, 48, 20
    k2 = jax.random.split(jax.random.PRNGKey(0), 6)
    x2 = jax.random.normal(k2[0], (B2, S2, E2), dtype=jnp.float32)
    w1_2 = jax.random.normal(k2[1], (E2, H2), dtype=jnp.float32) * 0.1
    b1_2 = jax.random.normal(k2[2], (H2,), dtype=jnp.float32) * 0.01
    w2_2 = jax.random.normal(k2[3], (H2, 1), dtype=jnp.float32) * 0.1
    b2_2 = jax.random.normal(k2[4], (1,), dtype=jnp.float32) * 0.01
    mask2 = (jax.random.uniform(k2[5], (B2, S2)) > 0.3).astype(jnp.float32)

    out2 = attention_pooling(x2, w1_2, b1_2, w2_2, b2_2, mask2)
    jax.block_until_ready(out2)
    ref2 = attention_pooling_ref(x2, w1_2, b1_2, w2_2, b2_2, mask2)
    assert out2.shape == (B2, E2)
    assert jnp.allclose(out2, ref2, atol=1e-5, rtol=1e-5)

    print("KERNEL_OK")
</pallas_src>

<mosaic_0001>
module attributes {stable_mosaic.version = 11 : i64} {
  func.func @_attn_pool_kernel_masked(%arg0: i32, %arg1: memref<2x8x32xf32, #tpu.memory_space<vmem>>, %arg2: memref<32x128xf32, #tpu.memory_space<vmem>>, %arg3: memref<1x128xf32, #tpu.memory_space<vmem>>, %arg4: memref<1x128xf32, #tpu.memory_space<vmem>>, %arg5: memref<1x1xf32, #tpu.memory_space<smem>>, %arg6: memref<2x8xf32, #tpu.memory_space<vmem>>, %arg7: memref<2x32xf32, #tpu.memory_space<vmem>>) attributes {dimension_semantics = [#tpu.dimension_semantics<parallel>], iteration_bounds = array<i64: 1>, scalar_prefetch = 0 : i64, scratch_operands = 0 : i64, tpu.core_type = #tpu.core_type<tc>, window_params = [{transform_indices = @transform_0, window_bounds = array<i64: 2, 8, 32>}, {pipeline_mode = #tpu.pipeline_mode<synchronous>, transform_indices = @transform_1, window_bounds = array<i64: 32, 128>}, {pipeline_mode = #tpu.pipeline_mode<synchronous>, transform_indices = @transform_2, window_bounds = array<i64: 1, 128>}, {pipeline_mode = #tpu.pipeline_mode<synchronous>, transform_indices = @transform_3, window_bounds = array<i64: 1, 128>}, {transform_indices = @transform_4, window_bounds = array<i64: 1, 1>}, {transform_indices = @transform_5, window_bounds = array<i64: 2, 8>}, {transform_indices = @transform_6, window_bounds = array<i64: 2, 32>}]} {
    %c0 = arith.constant 0 : index
    %c0_0 = arith.constant 0 : index
    %c0_1 = arith.constant 0 : index
    %0 = vector.load %arg1[%c0, %c0_0, %c0_1] : memref<2x8x32xf32, #tpu.memory_space<vmem>>, vector<2x8x32xf32>
    %1 = vector.shape_cast %0 : vector<2x8x32xf32> to vector<16x32xf32>
    %c0_2 = arith.constant 0 : index
    %c0_3 = arith.constant 0 : index
    %2 = vector.load %arg2[%c0_2, %c0_3] : memref<32x128xf32, #tpu.memory_space<vmem>>, vector<32x128xf32>
    %cst = arith.constant dense<0.000000e+00> : vector<16x128xf32>
    %3 = tpu.matmul %1, %2, %cst {dimension_numbers = #tpu.dot_dimension_numbers<[1], [0], [0], [1], [0, 0, 1, 1], [], []>} : vector<16x32xf32>, vector<32x128xf32>, vector<16x128xf32> -> vector<16x128xf32>
    %c0_4 = arith.constant 0 : index
    %c0_5 = arith.constant 0 : index
    %4 = vector.load %arg3[%c0_4, %c0_5] : memref<1x128xf32, #tpu.memory_space<vmem>>, vector<1x128xf32>
    %5 = vector.broadcast %4 : vector<1x128xf32> to vector<16x128xf32>
    %6 = arith.addf %3, %5 : vector<16x128xf32>
    %7 = math.tanh %6 : vector<16x128xf32>
    %c0_6 = arith.constant 0 : index
    %c0_7 = arith.constant 0 : index
    %8 = vector.load %arg4[%c0_6, %c0_7] : memref<1x128xf32, #tpu.memory_space<vmem>>, vector<1x128xf32>
    %9 = vector.broadcast %8 : vector<1x128xf32> to vector<16x128xf32>
    %10 = arith.mulf %7, %9 : vector<16x128xf32>
    %cst_8 = arith.constant dense<0.000000e+00> : vector<16xf32>
    %11 = vector.multi_reduction <add>, %10, %cst_8 [1] : vector<16x128xf32> to vector<16xf32>
    %12 = vector.shape_cast %11 : vector<16xf32> to vector<16x1xf32>
    %c0_9 = arith.constant 0 : index
    %c0_10 = arith.constant 0 : index
    %13 = memref.load %arg5[%c0_9, %c0_10] : memref<1x1xf32, #tpu.memory_space<smem>>
    %14 = vector.broadcast %13 : f32 to vector<16x1xf32>
    %15 = arith.addf %12, %14 : vector<16x1xf32>
    %16 = math.exp %15 : vector<16x1xf32>
    %17 = vector.shape_cast %16 : vector<16x1xf32> to vector<2x8x1xf32>
    %c0_11 = arith.constant 0 : index
    %c0_12 = arith.constant 0 : index
    %18 = vector.load %arg6[%c0_11, %c0_12] : memref<2x8xf32, #tpu.memory_space<vmem>>, vector<2x8xf32>
    %19 = vector.shape_cast %18 : vector<2x8xf32> to vector<2x8x1xf32>
    %20 = arith.mulf %17, %19 : vector<2x8x1xf32>
    %cst_13 = arith.constant dense<0.000000e+00> : vector<2x1xf32>
    %21 = vector.multi_reduction <add>, %20, %cst_13 [1] : vector<2x8x1xf32> to vector<2x1xf32>
    %22 = vector.shape_cast %21 : vector<2x1xf32> to vector<2x1x1xf32>
    %cst_14 = arith.constant 9.99999993E-9 : f32
    %23 = vector.broadcast %cst_14 : f32 to vector<2x1x1xf32>
    %24 = arith.addf %22, %23 : vector<2x1x1xf32>
    %cst_15 = arith.constant 1.000000e+00 : f32
    %25 = vector.broadcast %cst_15 : f32 to vector<2x1x1xf32>
    %26 = arith.divf %25, %24 : vector<2x1x1xf32>
    %27 = vector.broadcast %26 : vector<2x1x1xf32> to vector<2x8x1xf32>
    %28 = arith.mulf %20, %27 : vector<2x8x1xf32>
    %29 = vector.broadcast %28 : vector<2x8x1xf32> to vector<2x8x32xf32>
    %30 = arith.mulf %0, %29 : vector<2x8x32xf32>
    %cst_16 = arith.constant dense<0.000000e+00> : vector<2x32xf32>
    %31 = vector.multi_reduction <add>, %30, %cst_16 [1] : vector<2x8x32xf32> to vector<2x32xf32>
    %c0_17 = arith.constant 0 : index
    %c0_18 = arith.constant 0 : index
    %32 = vector.load %arg7[%c0_17, %c0_18] : memref<2x32xf32, #tpu.memory_space<vmem>>, vector<2x32xf32>
    tpu.vector_store %arg7[%c0_17, %c0_18], %31 {strides = array<i32>} : memref<2x32xf32, #tpu.memory_space<vmem>>, vector<2x32xf32>,
    return
  }
  func.func @transform_0(%arg0: i32) -> (i32, i32, i32) {
    %c0_i32 = arith.constant 0 : i32
    %c0_i32_0 = arith.constant 0 : i32
    %c0_i32_1 = arith.constant 0 : i32
    return %arg0, %c0_i32, %c0_i32_0 : i32, i32, i32
  }
  func.func @transform_1(%arg0: i32) -> (i32, i32) {
    %c0_i32 = arith.constant 0 : i32
    %c0_i32_0 = arith.constant 0 : i32
    %c0_i32_1 = arith.constant 0 : i32
    return %c0_i32, %c0_i32_0 : i32, i32
  }
  func.func @transform_2(%arg0: i32) -> (i32, i32) {
    %c0_i32 = arith.constant 0 : i32
    %c0_i32_0 = arith.constant 0 : i32
    %c0_i32_1 = arith.constant 0 : i32
    return %c0_i32, %c0_i32_0 : i32, i32
  }
  func.func @transform_3(%arg0: i32) -> (i32, i32) {
    %c0_i32 = arith.constant 0 : i32
    %c0_i32_0 = arith.constant 0 : i32
    %c0_i32_1 = arith.constant 0 : i32
    return %c0_i32, %c0_i32_0 : i32, i32
  }
  func.func @transform_4(%arg0: i32) -> (i32, i32) {
    %c0_i32 = arith.constant 0 : i32
    %c0_i32_0 = arith.constant 0 : i32
    %c0_i32_1 = arith.constant 0 : i32
    return %c0_i32, %c0_i32_0 : i32, i32
  }
  func.func @transform_5(%arg0: i32) -> (i32, i32) {
    %c0_i32 = arith.constant 0 : i32
    %c0_i32_0 = arith.constant 0 : i32
    return %arg0, %c0_i32 : i32, i32
  }
  func.func @transform_6(%arg0: i32) -> (i32, i32) {
    %c0_i32 = arith.constant 0 : i32
    %c0_i32_0 = arith.constant 0 : i32
    return %arg0, %c0_i32 : i32, i32
  }
}

</mosaic_0001>

<llo_original>
// kernel: tpu_custom_call.1
$region0: #{tpu_custom_call.1}
  #allocation0 [shape = 'u32[]', space=smem, size = 0x4, offset = 0x4, fixed_abs, tag = 'smem constant byte address 0x4 - core index']
  #allocation1 [shape = 'u32[72,128]{1,0:T(1,128)}', space=vmem, size = 0x9000, scoped, tag = 'internal scratch']
  #allocation2 [shape = 'f32[1,1]{1,0:T(1,128)S(6)}', space=smem, size = 0x200, scoped, tag = 'scoped memory for tpu_custom_call.1']
  %s0 = inlined_call_operand.hbm [shape: f32[2,8,32], index: 0, kind: input, shape index: {}]
  %s1 = inlined_call_operand.hbm [shape: f32[32,128], index: 1, kind: input, shape index: {}]
  %s2 = inlined_call_operand.vmem [shape: f32[1,128], index: 2, kind: input, shape index: {}]
  %s3 = inlined_call_operand.vmem [shape: f32[1,128], index: 3, kind: input, shape index: {}]
  %s4 = inlined_call_operand.<no memory space> [shape: f32[1,1], index: 4, kind: input, shape index: {}]
  %s5 = inlined_call_operand.vmem [shape: f32[2,8], index: 5, kind: input, shape index: {}]
  %s6 = inlined_call_operand.hbm [shape: f32[2,32], index: 6, kind: output, shape index: {}]
  %s7 = sld [smem:[#allocation0]]
  $region42: #{tpu_custom_call.1} parent=0
    _
  %s9 = ssub.s32 1, %s7
  %s10 = scalar_select 0, %s9, %s7
  %11 = sst [smem:[#allocation2]] %s4
  $region1: #{tpu_custom_call.1} parent=0
    #allocation3 [shape = 'u8[8192]{0}', space=vmem, size = 0x2000, scoped, tag = 'input window, operand 0, single buffered']
    #allocation4 [shape = 's32[1]{0}', space=sflag, size = 0x4, scoped, tag = 'scoped memory for tpu_custom_call.1']
    #allocation5 [shape = 's32[1]{0}', space=sflag, size = 0x4, scoped, tag = 'scoped memory for tpu_custom_call.1']
    #allocation6 [shape = 'u8[16384]{0}', space=vmem, size = 0x4000, scoped, tag = 'input window, operand 1, single buffered']
    #allocation7 [shape = 's32[1]{0}', space=sflag, size = 0x4, scoped, tag = 'scoped memory for tpu_custom_call.1']
    #allocation8 [shape = 'u8[1024]{0}', space=vmem, size = 0x400, scoped, tag = 'output window, operand 0, single buffered']
    %12 = vsyncpa [#allocation4], 0
    %13 = vsyncpa [#allocation7], 0
    %14 = vsyncpa [#allocation5], 0
    // Predicated region
    $region2: #{tpu_custom_call.1} parent=1 // pred_check
      _
    $region3: #{tpu_custom_call.1} parent=1 // pred_check_branch
      %16 = sbr.rel (0) target = $region5
    $region4: #{tpu_custom_call.1} parent=1 // pred_region
      %18 = vsyncadd [#allocation4], 0
      %s19 = sshll.u32 %s0, 4
      %s20 = int_to_ptr.hbm [resolvable:$true] %s19
      %s21 = sshll.u32 [#allocation3], 4
      %s22 = int_to_ptr.vmem [resolvable:$true] %s21
      %27 = dma.hbm_to_vmem [thread:$0]  %s20, 256, %s22, [#allocation4], 128, 128, 8
    $region5: #{tpu_custom_call.1} parent=1 // pred_fallthru
      _
    // Predicated region
    $region6: #{tpu_custom_call.1} parent=1 // pred_check
      _
    $region7: #{tpu_custom_call.1} parent=1 // pred_check_branch
      %29 = sbr.rel (0) target = $region9
    $region8: #{tpu_custom_call.1} parent=1 // pred_region
      %31 = vsyncadd [#allocation7], 0
      %s32 = sshll.u32 %s1, 4
      %s33 = int_to_ptr.hbm [resolvable:$true] %s32
      %s34 = sshll.u32 [#allocation6], 4
      %s35 = int_to_ptr.vmem [resolvable:$true] %s34
      %40 = dma.hbm_to_vmem [thread:$0]  %s33, 512, %s35, [#allocation7], 128, 128, 8
    $region9: #{tpu_custom_call.1} parent=1 // pred_fallthru
      _
    // Predicated region
    $region10: #{tpu_custom_call.1} parent=1 // pred_check
      _
    $region11: #{tpu_custom_call.1} parent=1 // pred_check_branch
      %42 = sbr.rel (0) target = $region13
    $region12: #{tpu_custom_call.1} parent=1 // pred_region
      _
    $region13: #{tpu_custom_call.1} parent=1 // pred_fallthru
      _
    // Predicated region
    $region14: #{tpu_custom_call.1} parent=1 // pred_check
      _
    $region15: #{tpu_custom_call.1} parent=1 // pred_check_branch
      %44 = sbr.rel (0) target = $region17
    $region16: #{tpu_custom_call.1} parent=1 // pred_region
      _
    $region17: #{tpu_custom_call.1} parent=1 // pred_fallthru
      _
    // Predicated region
    $region18: #{tpu_custom_call.1} parent=1 // pred_check
      _
    $region19: #{tpu_custom_call.1} parent=1 // pred_check_branch
      %46 = sbr.rel (0) target = $region21
    $region20: #{tpu_custom_call.1} parent=1 // pred_region
      _
    $region21: #{tpu_custom_call.1} parent=1 // pred_fallthru
      _
    // Predicated region
    $region22: #{tpu_custom_call.1} parent=1 // pred_check
      _
    $region23: #{tpu_custom_call.1} parent=1 // pred_check_branch
      %48 = sbr.rel (0) target = $region25
    $region24: #{tpu_custom_call.1} parent=1 // pred_region
      _
    $region25: #{tpu_custom_call.1} parent=1 // pred_fallthru
      _
    // Predicated region
    $region26: #{tpu_custom_call.1} parent=1 // pred_check
      _
    $region27: #{tpu_custom_call.1} parent=1 // pred_check_branch
      %50 = sbr.rel (0) target = $region29
    $region28: #{tpu_custom_call.1} parent=1 // pred_region
      %52 = dma.done [#allocation4], 256
    $region29: #{tpu_custom_call.1} parent=1 // pred_fallthru
      _
    // Predicated region
    $region30: #{tpu_custom_call.1} parent=1 // pred_check
      _
    $region31: #{tpu_custom_call.1} parent=1 // pred_check_branch
      %54 = sbr.rel (0) target = $region33
    $region32: #{tpu_custom_call.1} parent=1 // pred_region
      %56 = dma.done [#allocation7], 512
    $region33: #{tpu_custom_call.1} parent=1 // pred_fallthru
      _
    %v57 = vld [vmem:[#allocation3] sm:$0xff]
    %v58 = vld [vmem:[#allocation3 + $0x8] sm:$0xff]
    %v59 = vld [vmem:[#allocation6] sm:$0xff]
    %v60 = vld [vmem:[#allocation6 + $0x8] sm:$0xff]
    %v61 = vld [vmem:[#allocation6 + $0x10] sm:$0xff]
    %v62 = vld [vmem:[#allocation6 + $0x18] sm:$0xff]
    %v63 = vld [vmem:[%s2] sm:$0x1]
    %v65 = vperm.slane %v63, 0
    %vm67 = vcmask 261120
    %v69 = vsel %vm67, %v57, 0
    %v72 = vsel %vm67, %v58, 0
    %74 = vmatpush.msra.mxu0 0.0
    %75 = vmatpush.msra.mxu0 0.0
    %76 = vmatpush.msra.mxu0 0.0
    %77 = vmatpush.msra.mxu0 0.0
    %78 = vmatpush.msra.mxu0 0.0
    %79 = vmatpush.msra.mxu0 0.0
    %80 = vmatpush.msra.mxu0 0.0
    %81 = vmatpush.msra.mxu0 0.0
    %82 = vmatpush.msra.mxu0 0.0
    %83 = vmatpush.msra.mxu0 0.0
    %84 = vmatpush.msra.mxu0 0.0
    %85 = vmatpush.msra.mxu0 0.0
    %86 = vmatpush.msra.mxu0 %v62
    %87 = vmatpush.msra.mxu0 %v61
    %88 = vmatpush.msra.mxu0 %v60
    %89 = vmatpush.msra.mxu0 %v59
    %90 = vmatmul.f32.gmra.mxu0 %v69
    %v91 = vpop.f32.mrf.mxu0
    %v92 = vadd.f32 %v65, %v91
    %93 = vmatmul.f32.gmra.mxu0 %v72
    %v94 = vpop.f32.mrf.mxu0
    %v95 = vadd.f32 %v65, %v94
    %96 = vdwg.mxu0
    %v97 = vtanh.pop %v92
    %v98 = vtanh.pop %v95
    %v99 = vld [vmem:[%s3] sm:$0x1]
    %v101 = vperm.slane %v99, 0
    %v103 = vmul.f32 %v97, %v101
    %v104 = vmul.f32 %v98, %v101
    %105 = vadd.xlane.f32.xlu0 %v103
    %v106 = vpop.xlane.xlu0 %105
    %107 = vadd.xlane.f32.xlu0 %v104
    %v108 = vpop.xlane.xlu0 %107
    %s109 = sld [smem:[#allocation2]]
    %v110 = vstv %s109
    %v111 = vadd.f32 %v106, %v110
    %v112 = vadd.f32 %v108, %v110
    %v113 = vmul.f32 %v111, 1.442695
    %v114 = vpow.pop %v113
    %v115 = vmul.f32 %v112, 1.442695
    %v116 = vpow.pop %v115
    %v117 = vld [vmem:[%s5] sm:$0x3]
    %v118 = vperm.slane %v117, 0
    %v119 = vlaneseq
    %v120 = vshrl.u32 %v119, 7
    %122 = vset.pattern.permute.xlu0 %v120
    %123 = vperm.xlu0 %122, %v118
    %v124 = vpop.permute.xlu0 %123
    %v125 = vperm.slane %v117, 1
    %v126 = vlaneseq
    %v127 = vshrl.u32 %v126, 7
    %129 = vset.pattern.permute.xlu0 %v127
    %130 = vperm.xlu0 %129, %v125
    %v131 = vpop.permute.xlu0 %130
    %v132 = vmul.f32 %v114, %v124
    %v133 = vmul.f32 %v116, %v131
    %v134 = vrot.slane %v132, 4
    %v135 = vadd.f32 %v132, %v134
    %v136 = vrot.slane %v135, 2
    %v137 = vadd.f32 %v135, %v136
    %v138 = vrot.slane %v137, 1
    %v139 = vadd.f32 %v137, %v138
    %v140 = vrot.slane %v133, 4
    %v141 = vadd.f32 %v133, %v140
    %v142 = vrot.slane %v141, 2
    %v143 = vadd.f32 %v141, %v142
    %v144 = vrot.slane %v143, 1
    %v145 = vadd.f32 %v143, %v144
    %v146 = vadd.f32 %v139, 1e-08
    %v147 = vadd.f32 %v145, 1e-08
    %v148 = vrcp.pop %v146
    %v149 = vmul.f32 %v146, %v148
    %v150 = vsub.f32 1.0, %v149
    %v151 = vmul.f32 %v148, %v150
    %v152 = vadd.f32 %v148, %v151
    %vm153 = vweird.f32 %v146
    %vm154 = vweird.f32 %v148
    %vm155 = vmor %vm153, %vm154
    %v156 = vsel %vm155, %v148, %v152
    %v157 = vand.u32 2147483647, %v146
    %vm158 = vcmp.eq.f32.partialorder %v157, 8.507059e+37
    %v159 = vand.u32 %v146, 2147483648
    %v160 = vor.u32 1.1754944e-38, %v159
    %v161 = vsel %vm158, %v160, %v156
    %v162 = vmul.f32 1.0, %v161
    %v163 = vrcp.pop %v147
    %v164 = vmul.f32 %v147, %v163
    %v165 = vsub.f32 1.0, %v164
    %v166 = vmul.f32 %v163, %v165
    %v167 = vadd.f32 %v163, %v166
    %vm168 = vweird.f32 %v147
    %vm169 = vweird.f32 %v163
    %vm170 = vmor %vm168, %vm169
    %v171 = vsel %vm170, %v163, %v167
    %v172 = vand.u32 2147483647, %v147
    %vm173 = vcmp.eq.f32.partialorder %v172, 8.507059e+37
    %v174 = vand.u32 %v147, 2147483648
    %v175 = vor.u32 1.1754944e-38, %v174
    %v176 = vsel %vm173, %v175, %v171
    %v177 = vmul.f32 1.0, %v176
    %v178 = vmul.f32 %v132, %v162
    %v179 = vmul.f32 %v133, %v177
    %v180 = vmul.f32 %v57, %v178
    %v181 = vmul.f32 %v58, %v179
    %v182 = vsel %vm67, %v180, 0.0
    %v183 = vrot.slane %v182, 4
    %v184 = vadd.f32 %v182, %v183
    %v185 = vrot.slane %v184, 2
    %v186 = vadd.f32 %v184, %v185
    %v187 = vrot.slane %v186, 1
    %v188 = vadd.f32 %v186, %v187
    %v189 = vsel %vm67, %v181, 0.0
    %v190 = vrot.slane %v189, 4
    %v191 = vadd.f32 %v189, %v190
    %v192 = vrot.slane %v191, 2
    %v193 = vadd.f32 %v191, %v192
    %v194 = vrot.slane %v193, 1
    %v195 = vadd.f32 %v193, %v194
    %vm198 = vcmask 1041409
    %v199 = vsel %vm198, %v195, %v188
    %vm201 = vcmask 254976
    %202 = vst.msk [vmem:[#allocation8] sm:$0x3] %vm201, %v199
    // Predicated region
    $region34: #{tpu_custom_call.1} parent=1 // pred_check
      _
    $region35: #{tpu_custom_call.1} parent=1 // pred_check_branch
      %204 = sbr.rel (0) target = $region37
    $region36: #{tpu_custom_call.1} parent=1 // pred_region
      %206 = vsyncadd [#allocation5], 0
      %s208 = sshll.u32 [#allocation8], 4
      %s209 = int_to_ptr.vmem [resolvable:$true] %s208
      %s210 = sshll.u32 %s6, 4
      %s211 = int_to_ptr.hbm [resolvable:$true] %s210
      %213 = dma.vmem_to_hbm [thread:$0]  %s209, 32, %s211, [#allocation5]
    $region37: #{tpu_custom_call.1} parent=1 // pred_fallthru
      _
    // Predicated region
    $region38: #{tpu_custom_call.1} parent=1 // pred_check
      _
    $region39: #{tpu_custom_call.1} parent=1 // pred_check_branch
      %215 = sbr.rel (0) target = $region41
    $region40: #{tpu_custom_call.1} parent=1 // pred_region
      %217 = dma.done [#allocation5], 32
    $region41: #{tpu_custom_call.1} parent=1 // pred_fallthru
      _
    %218 = vsyncpa [#allocation4], 1
    %219 = vsyncpa [#allocation7], 1
    %220 = vsyncpa [#allocation5], 1

</llo_original>
